<compile_context>
chip_gen: v7x
topology: tpu7x:2x2x1
jax: 0.10.0
libtpu: 0.0.40
codegen_flags: <defaults>
</compile_context>

<pallas_src>
import jax
import jax.numpy as jnp
from jax.experimental import pallas as pl
from jax.experimental.pallas import tpu as pltpu


def _round_up(x, m):
    return ((x + m - 1) // m) * m


def qnet_rollout_kernel(x_ref, h0_ref,
                        w1_ref, b1_ref,
                        wgx_ref, wgh_ref, bg_ref,
                        w2p_ref, b2p_ref,
                        out_ref, h_scr):
    """One grid step = one RNN timestep for one batch block."""
    t = pl.program_id(1)
    H = h_scr.shape[-1]

    @pl.when(t == 0)
    def _():
        h_scr[...] = h0_ref[...]

    x = x_ref[0]          # (tb, D)
    h = h_scr[...]        # (tb, H)

    # fc1 + ReLU
    xa = jnp.maximum(
        jnp.dot(x, w1_ref[...], preferred_element_type=jnp.float32) + b1_ref[...],
        0.0)

    # GRUCell gate pre-activations: two lane-dense dots into the packed
    # [r_pre, z_pre, i_n, h_n] layout (4H = 128 lanes when H = 32).
    g = (jnp.dot(xa, wgx_ref[...], preferred_element_type=jnp.float32)
         + jnp.dot(h, wgh_ref[...], preferred_element_type=jnp.float32)
         + bg_ref[...])
    r = jax.nn.sigmoid(g[:, 0:H])
    z = jax.nn.sigmoid(g[:, H:2 * H])
    n = jnp.tanh(g[:, 2 * H:3 * H] + r * g[:, 3 * H:4 * H])
    h_new = (1.0 - z) * n + z * h

    # fc2 packed as [I_H | W2 | 0]: one dot produces the lane-dense output
    # slab [h_new | q | 0] -> a single unmasked 128-lane store.
    slab = jnp.dot(h_new, w2p_ref[...],
                   preferred_element_type=jnp.float32) + b2p_ref[...]

    out_ref[0] = slab.astype(out_ref.dtype)
    h_scr[...] = h_new


def pack_params(p, n_actions):
    """Pack raw (PyTorch-layout, pre-transposed) params into kernel layout."""
    H = p["w1"].shape[1]
    A = n_actions
    P = max(128, _round_up(H + A, 128))   # lane-dense output slab width

    # Packed gate weights, columns = [r_pre, z_pre, i_n, h_n].
    wih, whh = p["wih"], p["whh"]         # each (H, 3H), cols = [r | z | n]
    bih, bhh = p["bih"][0], p["bhh"][0]   # (3H,)

    wgx = jnp.zeros((H, 4 * H), jnp.float32)
    wgx = wgx.at[:, 0:H].set(wih[:, 0:H])
    wgx = wgx.at[:, H:2 * H].set(wih[:, H:2 * H])
    wgx = wgx.at[:, 2 * H:3 * H].set(wih[:, 2 * H:3 * H])

    wgh = jnp.zeros((H, 4 * H), jnp.float32)
    wgh = wgh.at[:, 0:H].set(whh[:, 0:H])
    wgh = wgh.at[:, H:2 * H].set(whh[:, H:2 * H])
    wgh = wgh.at[:, 3 * H:4 * H].set(whh[:, 2 * H:3 * H])

    bg = jnp.concatenate([
        bih[0:H] + bhh[0:H],
        bih[H:2 * H] + bhh[H:2 * H],
        bih[2 * H:3 * H],
        bhh[2 * H:3 * H],
    ])[None, :]                            # (1, 4H)

    # fc2 packed with an identity block so slab = [h_new | q | 0] in one dot.
    w2p = jnp.zeros((H, P), jnp.float32)
    w2p = w2p.at[:, :H].set(jnp.eye(H, dtype=jnp.float32))
    w2p = w2p.at[:, H:H + A].set(p["w2"])
    b2p = jnp.zeros((1, P), jnp.float32).at[:, H:H + A].set(p["b2"])

    return {"w1": p["w1"], "b1": p["b1"], "wgx": wgx, "wgh": wgh, "bg": bg,
            "w2p": w2p, "b2p": b2p, "H": H, "A": A, "P": P}


def qnet_rollout(xs, h0, packed):
    """xs: [T, B, D], h0: [B, H] -> (qs [T, B, A], h_final [B, H])."""
    T, B, D = xs.shape
    H, A, P = packed["H"], packed["A"], packed["P"]

    # Batch tile: whole batch when small; for large batches (n_agents*n_envs)
    # a tile of 256 rows lets the leading "parallel" axis shard across v7x's
    # two TensorCores while keeping per-core VMEM use tiny.
    tb = B if B <= 256 else 256
    assert B % tb == 0

    const = lambda b, t: (0, 0)   # weights: same block every step -> VMEM-resident

    slab = pl.pallas_call(
        qnet_rollout_kernel,
        out_shape=jax.ShapeDtypeStruct((T, B, P), jnp.float32),
        grid_spec=pltpu.PrefetchScalarGridSpec(
            num_scalar_prefetch=0,
            grid=(B // tb, T),
            in_specs=[
                pl.BlockSpec((1, tb, D), lambda b, t: (t, b, 0)),   # x_t
                pl.BlockSpec((tb, H), lambda b, t: (b, 0)),         # h0
                pl.BlockSpec(packed["w1"].shape, const),
                pl.BlockSpec(packed["b1"].shape, const),
                pl.BlockSpec(packed["wgx"].shape, const),
                pl.BlockSpec(packed["wgh"].shape, const),
                pl.BlockSpec(packed["bg"].shape, const),
                pl.BlockSpec(packed["w2p"].shape, const),
                pl.BlockSpec(packed["b2p"].shape, const),
            ],
            out_specs=pl.BlockSpec((1, tb, P), lambda b, t: (t, b, 0)),
            scratch_shapes=[pltpu.VMEM((tb, H), jnp.float32)],
        ),
        compiler_params=pltpu.CompilerParams(
            dimension_semantics=("parallel", "arbitrary")),
    )(xs, h0, packed["w1"], packed["b1"], packed["wgx"], packed["wgh"],
      packed["bg"], packed["w2p"], packed["b2p"])

    qs = slab[:, :, H:H + A]
    h_final = slab[-1, :, :H]
    return qs, h_final


def qnet_forward(x, h, packed):
    """Single-timestep forward matching RNNAgent.forward (T == 1 rollout)."""
    qs, h_new = qnet_rollout(x[None], h, packed)
    return qs[0], h_new


def init_params(key, input_shape, hidden, n_actions):
    """Deterministic synthetic parameters (PyTorch-equivalent shapes, pre-transposed)."""
    ks = jax.random.split(key, 10)
    scale = 0.1
    return {
        # fc1: nn.Linear(input_shape, hidden) -> stored as [in, out]
        "w1": scale * jax.random.normal(ks[0], (input_shape, hidden), jnp.float32),
        "b1": scale * jax.random.normal(ks[1], (1, hidden), jnp.float32),
        # GRUCell(hidden, hidden): weight_ih/[hh] [3H, H] -> stored transposed [H, 3H]
        "wih": scale * jax.random.normal(ks[2], (hidden, 3 * hidden), jnp.float32),
        "bih": scale * jax.random.normal(ks[3], (1, 3 * hidden), jnp.float32),
        "whh": scale * jax.random.normal(ks[4], (hidden, 3 * hidden), jnp.float32),
        "bhh": scale * jax.random.normal(ks[5], (1, 3 * hidden), jnp.float32),
        # fc2: nn.Linear(hidden, n_actions) -> stored as [in, out]
        "w2": scale * jax.random.normal(ks[6], (hidden, n_actions), jnp.float32),
        "b2": scale * jax.random.normal(ks[7], (1, n_actions), jnp.float32),
    }


def reference_forward(x, h, p):
    """Plain-JAX reference mirroring RNNAgent.forward (PyTorch GRUCell semantics)."""
    xa = jnp.maximum(x @ p["w1"] + p["b1"], 0.0)
    gi = xa @ p["wih"] + p["bih"]
    gh = h @ p["whh"] + p["bhh"]
    H = h.shape[1]
    r = jax.nn.sigmoid(gi[:, :H] + gh[:, :H])
    z = jax.nn.sigmoid(gi[:, H:2 * H] + gh[:, H:2 * H])
    n = jnp.tanh(gi[:, 2 * H:] + r * gh[:, 2 * H:])
    h_new = (1.0 - z) * n + z * h
    q = h_new @ p["w2"] + p["b2"]
    return q, h_new


if __name__ == "__main__":
    # Small shapes consistent with the module.
    n_agents = 8          # batch of agents
    input_shape = 32      # per-agent observation dim
    rnn_hidden_dim = 32
    n_actions = 8
    T = 8                 # rollout length (time loop lives inside the kernel)

    key = jax.random.PRNGKey(0)
    k_obs, k_par = jax.random.split(key)

    raw = init_params(k_par, input_shape, rnn_hidden_dim, n_actions)
    packed = pack_params(raw, n_actions)

    # QNet.init_hidden(): zeros expanded over agents.
    h0 = jnp.zeros((n_agents, rnn_hidden_dim), jnp.float32)
    xs = jax.random.normal(k_obs, (T, n_agents, input_shape), jnp.float32)

    # Single-step forward (the module's forward signature).
    q1, h1 = qnet_forward(xs[0], h0, packed)
    q1 = jax.block_until_ready(q1)
    h1 = jax.block_until_ready(h1)
    q1_ref, h1_ref = reference_forward(xs[0], h0, raw)
    assert jnp.allclose(q1, q1_ref, atol=1e-4), "single-step q mismatch"
    assert jnp.allclose(h1, h1_ref, atol=1e-4), "single-step hidden mismatch"

    # Full rollout: weights stay VMEM-resident, h carried in VMEM scratch.
    qs, h_final = qnet_rollout(xs, h0, packed)
    qs = jax.block_until_ready(qs)
    h_final = jax.block_until_ready(h_final)

    def step(h, x):
        q, h = reference_forward(x, h, raw)
        return h, q

    h_ref_final, qs_ref = jax.lax.scan(step, h0, xs)
    assert jnp.allclose(qs, qs_ref, atol=1e-4), "rollout q mismatch"
    assert jnp.allclose(h_final, h_ref_final, atol=1e-4), "rollout hidden mismatch"

    # TODO(synk): EpsilonGreedyActionSelector.select_action (host-side epsilon
    # schedule + categorical sampling) is action-selection glue, not part of
    # QNet.forward; omitted from the kernel.
    print("KERNEL_OK")
</pallas_src>

<mosaic_0001>
module attributes {stable_mosaic.version = 11 : i64} {
  func.func @qnet_rollout_kernel(%arg0: i32, %arg1: i32, %arg2: memref<1x8x32xf32, #tpu.memory_space<vmem>>, %arg3: memref<8x32xf32, #tpu.memory_space<vmem>>, %arg4: memref<32x32xf32, #tpu.memory_space<vmem>>, %arg5: memref<1x32xf32, #tpu.memory_space<vmem>>, %arg6: memref<32x128xf32, #tpu.memory_space<vmem>>, %arg7: memref<32x128xf32, #tpu.memory_space<vmem>>, %arg8: memref<1x128xf32, #tpu.memory_space<vmem>>, %arg9: memref<32x128xf32, #tpu.memory_space<vmem>>, %arg10: memref<1x128xf32, #tpu.memory_space<vmem>>, %arg11: memref<1x8x128xf32, #tpu.memory_space<vmem>>, %arg12: memref<8x32xf32, #tpu.memory_space<vmem>>) attributes {dimension_semantics = [#tpu.dimension_semantics<parallel>, #tpu.dimension_semantics<arbitrary>], iteration_bounds = array<i64: 1, 1>, scalar_prefetch = 0 : i64, scratch_operands = 1 : i64, tpu.core_type = #tpu.core_type<tc>, window_params = [{transform_indices = @transform_0, window_bounds = array<i64: 1, 8, 32>}, {transform_indices = @transform_1, window_bounds = array<i64: 8, 32>}, {pipeline_mode = #tpu.pipeline_mode<synchronous>, transform_indices = @transform_2, window_bounds = array<i64: 32, 32>}, {pipeline_mode = #tpu.pipeline_mode<synchronous>, transform_indices = @transform_3, window_bounds = array<i64: 1, 32>}, {pipeline_mode = #tpu.pipeline_mode<synchronous>, transform_indices = @transform_4, window_bounds = array<i64: 32, 128>}, {pipeline_mode = #tpu.pipeline_mode<synchronous>, transform_indices = @transform_5, window_bounds = array<i64: 32, 128>}, {pipeline_mode = #tpu.pipeline_mode<synchronous>, transform_indices = @transform_6, window_bounds = array<i64: 1, 128>}, {pipeline_mode = #tpu.pipeline_mode<synchronous>, transform_indices = @transform_7, window_bounds = array<i64: 32, 128>}, {pipeline_mode = #tpu.pipeline_mode<synchronous>, transform_indices = @transform_8, window_bounds = array<i64: 1, 128>}, {transform_indices = @transform_9, window_bounds = array<i64: 1, 8, 128>}]} {
    %c0_i32 = arith.constant 0 : i32
    %0 = arith.cmpi eq, %arg1, %c0_i32 : i32
    %1 = arith.extui %0 : i1 to i32
    %c0_i32_0 = arith.constant 0 : i32
    %2 = arith.cmpi ne, %1, %c0_i32_0 : i32
    scf.if %2 {
      %c0_31 = arith.constant 0 : index
      %c0_32 = arith.constant 0 : index
      %52 = vector.load %arg3[%c0_31, %c0_32] : memref<8x32xf32, #tpu.memory_space<vmem>>, vector<8x32xf32>
      %c0_33 = arith.constant 0 : index
      %c0_34 = arith.constant 0 : index
      %53 = vector.load %arg12[%c0_33, %c0_34] : memref<8x32xf32, #tpu.memory_space<vmem>>, vector<8x32xf32>
      tpu.vector_store %arg12[%c0_33, %c0_34], %52 {strides = array<i32>} : memref<8x32xf32, #tpu.memory_space<vmem>>, vector<8x32xf32>,
    } else {
    }
    %c0 = arith.constant 0 : index
    %c0_1 = arith.constant 0 : index
    %c0_2 = arith.constant 0 : index
    %3 = vector.load %arg2[%c0, %c0_1, %c0_2] : memref<1x8x32xf32, #tpu.memory_space<vmem>>, vector<1x8x32xf32>
    %4 = vector.shape_cast %3 : vector<1x8x32xf32> to vector<8x32xf32>
    %c0_3 = arith.constant 0 : index
    %c0_4 = arith.constant 0 : index
    %5 = vector.load %arg12[%c0_3, %c0_4] : memref<8x32xf32, #tpu.memory_space<vmem>>, vector<8x32xf32>
    %c0_5 = arith.constant 0 : index
    %c0_6 = arith.constant 0 : index
    %6 = vector.load %arg4[%c0_5, %c0_6] : memref<32x32xf32, #tpu.memory_space<vmem>>, vector<32x32xf32>
    %cst = arith.constant dense<0.000000e+00> : vector<8x32xf32>
    %7 = tpu.matmul %4, %6, %cst {dimension_numbers = #tpu.dot_dimension_numbers<[1], [0], [0], [1], [0, 0, 1, 1], [], []>} : vector<8x32xf32>, vector<32x32xf32>, vector<8x32xf32> -> vector<8x32xf32>
    %c0_7 = arith.constant 0 : index
    %c0_8 = arith.constant 0 : index
    %8 = vector.load %arg5[%c0_7, %c0_8] : memref<1x32xf32, #tpu.memory_space<vmem>>, vector<1x32xf32>
    %9 = vector.broadcast %8 : vector<1x32xf32> to vector<8x32xf32>
    %10 = arith.addf %7, %9 : vector<8x32xf32>
    %cst_9 = arith.constant 0.000000e+00 : f32
    %11 = vector.broadcast %cst_9 : f32 to vector<8x32xf32>
    %12 = arith.maximumf %10, %11 : vector<8x32xf32>
    %c0_10 = arith.constant 0 : index
    %c0_11 = arith.constant 0 : index
    %13 = vector.load %arg6[%c0_10, %c0_11] : memref<32x128xf32, #tpu.memory_space<vmem>>, vector<32x128xf32>
    %cst_12 = arith.constant dense<0.000000e+00> : vector<8x128xf32>
    %14 = tpu.matmul %12, %13, %cst_12 {dimension_numbers = #tpu.dot_dimension_numbers<[1], [0], [0], [1], [0, 0, 1, 1], [], []>} : vector<8x32xf32>, vector<32x128xf32>, vector<8x128xf32> -> vector<8x128xf32>
    %c0_13 = arith.constant 0 : index
    %c0_14 = arith.constant 0 : index
    %15 = vector.load %arg7[%c0_13, %c0_14] : memref<32x128xf32, #tpu.memory_space<vmem>>, vector<32x128xf32>
    %cst_15 = arith.constant dense<0.000000e+00> : vector<8x128xf32>
    %16 = tpu.matmul %5, %15, %cst_15 {dimension_numbers = #tpu.dot_dimension_numbers<[1], [0], [0], [1], [0, 0, 1, 1], [], []>} : vector<8x32xf32>, vector<32x128xf32>, vector<8x128xf32> -> vector<8x128xf32>
    %17 = arith.addf %14, %16 : vector<8x128xf32>
    %c0_16 = arith.constant 0 : index
    %c0_17 = arith.constant 0 : index
    %18 = vector.load %arg8[%c0_16, %c0_17] : memref<1x128xf32, #tpu.memory_space<vmem>>, vector<1x128xf32>
    %19 = vector.broadcast %18 : vector<1x128xf32> to vector<8x128xf32>
    %20 = arith.addf %17, %19 : vector<8x128xf32>
    %21 = vector.extract_strided_slice %20 {offsets = [0, 0], sizes = [8, 32], strides = [1, 1]} : vector<8x128xf32> to vector<8x32xf32>
    %22 = arith.negf %21 : vector<8x32xf32>
    %23 = math.exp %22 : vector<8x32xf32>
    %cst_18 = arith.constant 1.000000e+00 : f32
    %24 = vector.broadcast %cst_18 : f32 to vector<8x32xf32>
    %25 = arith.addf %24, %23 : vector<8x32xf32>
    %26 = arith.divf %24, %25 : vector<8x32xf32>
    %27 = vector.extract_strided_slice %20 {offsets = [0, 32], sizes = [8, 32], strides = [1, 1]} : vector<8x128xf32> to vector<8x32xf32>
    %28 = arith.negf %27 : vector<8x32xf32>
    %29 = math.exp %28 : vector<8x32xf32>
    %cst_19 = arith.constant 1.000000e+00 : f32
    %30 = vector.broadcast %cst_19 : f32 to vector<8x32xf32>
    %31 = arith.addf %30, %29 : vector<8x32xf32>
    %32 = arith.divf %30, %31 : vector<8x32xf32>
    %33 = vector.extract_strided_slice %20 {offsets = [0, 64], sizes = [8, 32], strides = [1, 1]} : vector<8x128xf32> to vector<8x32xf32>
    %34 = vector.extract_strided_slice %20 {offsets = [0, 96], sizes = [8, 32], strides = [1, 1]} : vector<8x128xf32> to vector<8x32xf32>
    %35 = arith.mulf %26, %34 : vector<8x32xf32>
    %36 = arith.addf %33, %35 : vector<8x32xf32>
    %37 = math.tanh %36 : vector<8x32xf32>
    %cst_20 = arith.constant 1.000000e+00 : f32
    %38 = vector.broadcast %cst_20 : f32 to vector<8x32xf32>
    %39 = arith.subf %38, %32 : vector<8x32xf32>
    %40 = arith.mulf %39, %37 : vector<8x32xf32>
    %41 = arith.mulf %32, %5 : vector<8x32xf32>
    %42 = arith.addf %40, %41 : vector<8x32xf32>
    %c0_21 = arith.constant 0 : index
    %c0_22 = arith.constant 0 : index
    %43 = vector.load %arg9[%c0_21, %c0_22] : memref<32x128xf32, #tpu.memory_space<vmem>>, vector<32x128xf32>
    %cst_23 = arith.constant dense<0.000000e+00> : vector<8x128xf32>
    %44 = tpu.matmul %42, %43, %cst_23 {dimension_numbers = #tpu.dot_dimension_numbers<[1], [0], [0], [1], [0, 0, 1, 1], [], []>} : vector<8x32xf32>, vector<32x128xf32>, vector<8x128xf32> -> vector<8x128xf32>
    %c0_24 = arith.constant 0 : index
    %c0_25 = arith.constant 0 : index
    %45 = vector.load %arg10[%c0_24, %c0_25] : memref<1x128xf32, #tpu.memory_space<vmem>>, vector<1x128xf32>
    %46 = vector.broadcast %45 : vector<1x128xf32> to vector<8x128xf32>
    %47 = arith.addf %44, %46 : vector<8x128xf32>
    %c0_26 = arith.constant 0 : index
    %c0_27 = arith.constant 0 : index
    %c0_28 = arith.constant 0 : index
    %48 = vector.load %arg11[%c0_26, %c0_27, %c0_28] : memref<1x8x128xf32, #tpu.memory_space<vmem>>, vector<1x8x128xf32>
    %49 = vector.shape_cast %48 : vector<1x8x128xf32> to vector<8x128xf32>
    %50 = vector.shape_cast %47 : vector<8x128xf32> to vector<1x8x128xf32>
    tpu.vector_store %arg11[%c0_26, %c0_27, %c0_28], %50 {strides = array<i32>} : memref<1x8x128xf32, #tpu.memory_space<vmem>>, vector<1x8x128xf32>,
    %c0_29 = arith.constant 0 : index
    %c0_30 = arith.constant 0 : index
    %51 = vector.load %arg12[%c0_29, %c0_30] : memref<8x32xf32, #tpu.memory_space<vmem>>, vector<8x32xf32>
    tpu.vector_store %arg12[%c0_29, %c0_30], %42 {strides = array<i32>} : memref<8x32xf32, #tpu.memory_space<vmem>>, vector<8x32xf32>,
    return
  }
  func.func @transform_0(%arg0: i32, %arg1: i32) -> (i32, i32, i32) {
    %c0_i32 = arith.constant 0 : i32
    %c0_i32_0 = arith.constant 0 : i32
    return %arg1, %arg0, %c0_i32 : i32, i32, i32
  }
  func.func @transform_1(%arg0: i32, %arg1: i32) -> (i32, i32) {
    %c0_i32 = arith.constant 0 : i32
    %c0_i32_0 = arith.constant 0 : i32
    return %arg0, %c0_i32 : i32, i32
  }
  func.func @transform_2(%arg0: i32, %arg1: i32) -> (i32, i32) {
    %c0_i32 = arith.constant 0 : i32
    %c0_i32_0 = arith.constant 0 : i32
    %c0_i32_1 = arith.constant 0 : i32
    return %c0_i32, %c0_i32_0 : i32, i32
  }
  func.func @transform_3(%arg0: i32, %arg1: i32) -> (i32, i32) {
    %c0_i32 = arith.constant 0 : i32
    %c0_i32_0 = arith.constant 0 : i32
    %c0_i32_1 = arith.constant 0 : i32
    return %c0_i32, %c0_i32_0 : i32, i32
  }
  func.func @transform_4(%arg0: i32, %arg1: i32) -> (i32, i32) {
    %c0_i32 = arith.constant 0 : i32
    %c0_i32_0 = arith.constant 0 : i32
    %c0_i32_1 = arith.constant 0 : i32
    return %c0_i32, %c0_i32_0 : i32, i32
  }
  func.func @transform_5(%arg0: i32, %arg1: i32) -> (i32, i32) {
    %c0_i32 = arith.constant 0 : i32
    %c0_i32_0 = arith.constant 0 : i32
    %c0_i32_1 = arith.constant 0 : i32
    return %c0_i32, %c0_i32_0 : i32, i32
  }
  func.func @transform_6(%arg0: i32, %arg1: i32) -> (i32, i32) {
    %c0_i32 = arith.constant 0 : i32
    %c0_i32_0 = arith.constant 0 : i32
    %c0_i32_1 = arith.constant 0 : i32
    return %c0_i32, %c0_i32_0 : i32, i32
  }
  func.func @transform_7(%arg0: i32, %arg1: i32) -> (i32, i32) {
    %c0_i32 = arith.constant 0 : i32
    %c0_i32_0 = arith.constant 0 : i32
    %c0_i32_1 = arith.constant 0 : i32
    return %c0_i32, %c0_i32_0 : i32, i32
  }
  func.func @transform_8(%arg0: i32, %arg1: i32) -> (i32, i32) {
    %c0_i32 = arith.constant 0 : i32
    %c0_i32_0 = arith.constant 0 : i32
    %c0_i32_1 = arith.constant 0 : i32
    return %c0_i32, %c0_i32_0 : i32, i32
  }
  func.func @transform_9(%arg0: i32, %arg1: i32) -> (i32, i32, i32) {
    %c0_i32 = arith.constant 0 : i32
    %c0_i32_0 = arith.constant 0 : i32
    return %arg1, %arg0, %c0_i32 : i32, i32, i32
  }
}

</mosaic_0001>

<llo_original>
// kernel: tpu_custom_call.1
$region0: #{tpu_custom_call.1}
  #allocation0 [shape = 'u32[]', space=smem, size = 0x4, offset = 0x4, fixed_abs, tag = 'smem constant byte address 0x4 - core index']
  #allocation1 [shape = 'u32[144,128]{1,0:T(1,128)}', space=vmem, size = 0x12000, scoped, tag = 'internal scratch']
  #allocation2 [shape = 'f32[8,32]{1,0:T(8,128)}', space=vmem, size = 0x1000, scoped, tag = 'scratch operand']
  %s0 = inlined_call_operand.hbm [shape: f32[1,8,32], index: 0, kind: input, shape index: {}]
  %s1 = inlined_call_operand.hbm [shape: f32[8,32], index: 1, kind: input, shape index: {}]
  %s2 = inlined_call_operand.hbm [shape: f32[32,32], index: 2, kind: input, shape index: {}]
  %s3 = inlined_call_operand.vmem [shape: f32[1,32], index: 3, kind: input, shape index: {}]
  %s4 = inlined_call_operand.hbm [shape: f32[32,128], index: 4, kind: input, shape index: {}]
  %s5 = inlined_call_operand.hbm [shape: f32[32,128], index: 5, kind: input, shape index: {}]
  %s6 = inlined_call_operand.vmem [shape: f32[1,128], index: 6, kind: input, shape index: {}]
  %s7 = inlined_call_operand.hbm [shape: f32[32,128], index: 7, kind: input, shape index: {}]
  %s8 = inlined_call_operand.vmem [shape: f32[1,128], index: 8, kind: input, shape index: {}]
  %s9 = inlined_call_operand.hbm [shape: f32[1,8,128], index: 9, kind: output, shape index: {}]
  %s10 = sld [smem:[#allocation0]]
  $region74: #{tpu_custom_call.1} parent=0
    _
  %s12 = ssub.s32 1, %s10
  %s13 = scalar_select 0, %s12, %s10
  $region1: #{tpu_custom_call.1} parent=0
    #allocation3 [shape = 'u8[4096]{0}', space=vmem, size = 0x1000, scoped, tag = 'input window, operand 0, single buffered']
    #allocation4 [shape = 's32[1]{0}', space=sflag, size = 0x4, scoped, tag = 'scoped memory for tpu_custom_call.1']
    #allocation5 [shape = 's32[1]{0}', space=sflag, size = 0x4, scoped, tag = 'scoped memory for tpu_custom_call.1']
    #allocation6 [shape = 'u8[4096]{0}', space=vmem, size = 0x1000, scoped, tag = 'input window, operand 1, single buffered']
    #allocation7 [shape = 's32[1]{0}', space=sflag, size = 0x4, scoped, tag = 'scoped memory for tpu_custom_call.1']
    #allocation8 [shape = 'u8[16384]{0}', space=vmem, size = 0x4000, scoped, tag = 'input window, operand 2, single buffered']
    #allocation9 [shape = 'u8[16384]{0}', space=vmem, size = 0x4000, scoped, tag = 'input window, operand 4, single buffered']
    #allocation10 [shape = 's32[1]{0}', space=sflag, size = 0x4, scoped, tag = 'scoped memory for tpu_custom_call.1']
    #allocation11 [shape = 'u8[16384]{0}', space=vmem, size = 0x4000, scoped, tag = 'input window, operand 5, single buffered']
    #allocation12 [shape = 'u8[16384]{0}', space=vmem, size = 0x4000, scoped, tag = 'input window, operand 7, single buffered']
    #allocation13 [shape = 's32[1]{0}', space=sflag, size = 0x4, scoped, tag = 'scoped memory for tpu_custom_call.1']
    #allocation14 [shape = 'u8[4096]{0}', space=vmem, size = 0x1000, scoped, tag = 'output window, operand 0, single buffered']
    %14 = vsyncpa [#allocation4], 0
    %15 = vsyncpa [#allocation7], 0
    %16 = vsyncpa [#allocation10], 0
    %17 = vsyncpa [#allocation13], 0
    %18 = vsyncpa [#allocation5], 0
    // Predicated region
    $region2: #{tpu_custom_call.1} parent=1 // pred_check
      _
    $region3: #{tpu_custom_call.1} parent=1 // pred_check_branch
      %20 = sbr.rel (0) target = $region5
    $region4: #{tpu_custom_call.1} parent=1 // pred_region
      %s22 = ssub.s32 128, 128
      %23 = vsyncadd [#allocation4], %s22
      %s25 = sshll.u32 [#allocation3], 4
      %s26 = int_to_ptr.vmem [resolvable:$true] %s25
      %28 = dma.hbm_to_vmem [thread:$0]  %s0, 128, %s26, [#allocation4]
    $region5: #{tpu_custom_call.1} parent=1 // pred_fallthru
      _
    // Predicated region
    $region6: #{tpu_custom_call.1} parent=1 // pred_check
      _
    $region7: #{tpu_custom_call.1} parent=1 // pred_check_branch
      %30 = sbr.rel (0) target = $region9
    $region8: #{tpu_custom_call.1} parent=1 // pred_region
      %s32 = ssub.s32 128, 128
      %33 = vsyncadd [#allocation7], %s32
      %s35 = sshll.u32 [#allocation6], 4
      %s36 = int_to_ptr.vmem [resolvable:$true] %s35
      %38 = dma.hbm_to_vmem [thread:$0]  %s1, 128, %s36, [#allocation7]
    $region9: #{tpu_custom_call.1} parent=1 // pred_fallthru
      _
    // Predicated region
    $region10: #{tpu_custom_call.1} parent=1 // pred_check
      _
    $region11: #{tpu_custom_call.1} parent=1 // pred_check_branch
      %40 = sbr.rel (0) target = $region13
    $region12: #{tpu_custom_call.1} parent=1 // pred_region
      %s42 = ssub.s32 512, 512
      %43 = vsyncadd [#allocation7], %s42
      %s44 = sshll.u32 [#allocation8], 4
      %s45 = int_to_ptr.vmem [resolvable:$true] %s44
      %50 = dma.hbm_to_vmem [thread:$0]  %s2, 512, %s45, [#allocation7], 128, 128, 8
    $region13: #{tpu_custom_call.1} parent=1 // pred_fallthru
      _
    // Predicated region
    $region14: #{tpu_custom_call.1} parent=1 // pred_check
      _
    $region15: #{tpu_custom_call.1} parent=1 // pred_check_branch
      %52 = sbr.rel (0) target = $region17
    $region16: #{tpu_custom_call.1} parent=1 // pred_region
      _
    $region17: #{tpu_custom_call.1} parent=1 // pred_fallthru
      _
    // Predicated region
    $region18: #{tpu_custom_call.1} parent=1 // pred_check
      _
    $region19: #{tpu_custom_call.1} parent=1 // pred_check_branch
      %54 = sbr.rel (0) target = $region21
    $region20: #{tpu_custom_call.1} parent=1 // pred_region
      %s56 = ssub.s32 512, 512
      %57 = vsyncadd [#allocation10], %s56
      %s58 = sshll.u32 [#allocation9], 4
      %s59 = int_to_ptr.vmem [resolvable:$true] %s58
      %64 = dma.hbm_to_vmem [thread:$0]  %s4, 512, %s59, [#allocation10], 128, 128, 8
    $region21: #{tpu_custom_call.1} parent=1 // pred_fallthru
      _
    // Predicated region
    $region22: #{tpu_custom_call.1} parent=1 // pred_check
      _
    $region23: #{tpu_custom_call.1} parent=1 // pred_check_branch
      %66 = sbr.rel (0) target = $region25
    $region24: #{tpu_custom_call.1} parent=1 // pred_region
      %s68 = ssub.s32 512, 512
      %69 = vsyncadd [#allocation10], %s68
      %s70 = sshll.u32 [#allocation11], 4
      %s71 = int_to_ptr.vmem [resolvable:$true] %s70
      %76 = dma.hbm_to_vmem [thread:$0]  %s5, 512, %s71, [#allocation10], 128, 128, 8
    $region25: #{tpu_custom_call.1} parent=1 // pred_fallthru
      _
    // Predicated region
    $region26: #{tpu_custom_call.1} parent=1 // pred_check
      _
    $region27: #{tpu_custom_call.1} parent=1 // pred_check_branch
      %78 = sbr.rel (0) target = $region29
    $region28: #{tpu_custom_call.1} parent=1 // pred_region
      _
    $region29: #{tpu_custom_call.1} parent=1 // pred_fallthru
      _
    // Predicated region
    $region30: #{tpu_custom_call.1} parent=1 // pred_check
      _
    $region31: #{tpu_custom_call.1} parent=1 // pred_check_branch
      %80 = sbr.rel (0) target = $region33
    $region32: #{tpu_custom_call.1} parent=1 // pred_region
      %s82 = ssub.s32 512, 512
      %83 = vsyncadd [#allocation13], %s82
      %s84 = sshll.u32 [#allocation12], 4
      %s85 = int_to_ptr.vmem [resolvable:$true] %s84
      %90 = dma.hbm_to_vmem [thread:$0]  %s7, 512, %s85, [#allocation13], 128, 128, 8
    $region33: #{tpu_custom_call.1} parent=1 // pred_fallthru
      _
    // Predicated region
    $region34: #{tpu_custom_call.1} parent=1 // pred_check
      _
    $region35: #{tpu_custom_call.1} parent=1 // pred_check_branch
      %92 = sbr.rel (0) target = $region37
    $region36: #{tpu_custom_call.1} parent=1 // pred_region
      _
    $region37: #{tpu_custom_call.1} parent=1 // pred_fallthru
      _
    // Predicated region
    $region38: #{tpu_custom_call.1} parent=1 // pred_check
      _
    $region39: #{tpu_custom_call.1} parent=1 // pred_check_branch
      %94 = sbr.rel (0) target = $region41
    $region40: #{tpu_custom_call.1} parent=1 // pred_region
      %95 = dma.done [#allocation4], 128
    $region41: #{tpu_custom_call.1} parent=1 // pred_fallthru
      _
    // Predicated region
    $region42: #{tpu_custom_call.1} parent=1 // pred_check
      _
    $region43: #{tpu_custom_call.1} parent=1 // pred_check_branch
      %97 = sbr.rel (0) target = $region45
    $region44: #{tpu_custom_call.1} parent=1 // pred_region
      %98 = dma.done [#allocation7], 128
    $region45: #{tpu_custom_call.1} parent=1 // pred_fallthru
      _
    // Predicated region
    $region46: #{tpu_custom_call.1} parent=1 // pred_check
      _
    $region47: #{tpu_custom_call.1} parent=1 // pred_check_branch
      %100 = sbr.rel (0) target = $region49
    $region48: #{tpu_custom_call.1} parent=1 // pred_region
      %101 = dma.done [#allocation7], 512
    $region49: #{tpu_custom_call.1} parent=1 // pred_fallthru
      _
    // Predicated region
    $region50: #{tpu_custom_call.1} parent=1 // pred_check
      _
    $region51: #{tpu_custom_call.1} parent=1 // pred_check_branch
      %103 = sbr.rel (0) target = $region53
    $region52: #{tpu_custom_call.1} parent=1 // pred_region
      %104 = dma.done [#allocation10], 512
    $region53: #{tpu_custom_call.1} parent=1 // pred_fallthru
      _
    // Predicated region
    $region54: #{tpu_custom_call.1} parent=1 // pred_check
      _
    $region55: #{tpu_custom_call.1} parent=1 // pred_check_branch
      %106 = sbr.rel (0) target = $region57
    $region56: #{tpu_custom_call.1} parent=1 // pred_region
      %107 = dma.done [#allocation10], 512
    $region57: #{tpu_custom_call.1} parent=1 // pred_fallthru
      _
    // Predicated region
    $region58: #{tpu_custom_call.1} parent=1 // pred_check
      _
    $region59: #{tpu_custom_call.1} parent=1 // pred_check_branch
      %109 = sbr.rel (0) target = $region61
    $region60: #{tpu_custom_call.1} parent=1 // pred_region
      %110 = dma.done [#allocation13], 512
    $region61: #{tpu_custom_call.1} parent=1 // pred_fallthru
      _
    %p111 = scmp.eq.s32.totalorder 0, 0
    // Predicated region
    $region62: #{tpu_custom_call.1} parent=1 // pred_check
      %p112 = pneg %p111
    $region63: #{tpu_custom_call.1} parent=1 // pred_check_branch
      %114 = sbr.rel (%p112) target = $region65
    $region64: #{tpu_custom_call.1} parent=1 // pred_region
      %v115 = vld [vmem:[#allocation6] sm:$0xff]
      %vm116 = vcmask 261120
      %117 = vst.msk [vmem:[#allocation2] sm:$0xff] %vm116, %v115
    $region65: #{tpu_custom_call.1} parent=1 // pred_fallthru
      _
    %v118 = vld [vmem:[#allocation3] sm:$0xff]
    %v119 = vld [vmem:[#allocation2] sm:$0xff]
    %v120 = vld [vmem:[#allocation8] sm:$0xff]
    %v121 = vld [vmem:[#allocation8 + $0x8] sm:$0xff]
    %v122 = vld [vmem:[#allocation8 + $0x10] sm:$0xff]
    %v123 = vld [vmem:[#allocation8 + $0x18] sm:$0xff]
    %v124 = vld [vmem:[%s3] sm:$0x1]
    %v126 = vlaneseq
    %v127 = vshrl.u32 %v126, 7
    %v128 = vsub.s32 0, %v127
    %v129 = vrot.slane %v124, %v128
    %vm131 = vcmask 261120
    %v133 = vsel %vm131, %v118, 0
    %135 = vmatprep.subr.mxu0 0.0
    %136 = vmatpush1.msra.mxu0 %v120
    %137 = vmatprep.subr.mxu0 0.0
    %138 = vmatpush1.msra.mxu0 %v121
    %139 = vmatprep.subr.mxu0 0.0
    %140 = vmatpush1.msra.mxu0 %v122
    %141 = vmatprep.subr.mxu0 0.0
    %142 = vmatpush1.msra.mxu0 %v123
    %143 = vmatprep.subr.mxu0 0.0
    %144 = vmatpush1.msra.mxu0 0.0
    %145 = vmatprep.subr.mxu0 0.0
    %146 = vmatpush1.msra.mxu0 0.0
    %147 = vmatprep.subr.mxu0 0.0
    %148 = vmatpush1.msra.mxu0 0.0
    %149 = vmatprep.subr.mxu0 0.0
    %150 = vmatpush1.msra.mxu0 0.0
    %151 = vmatprep.subr.mxu0 0.0
    %152 = vmatpush1.msra.mxu0 0.0
    %153 = vmatprep.subr.mxu0 0.0
    %154 = vmatpush1.msra.mxu0 0.0
    %155 = vmatprep.subr.mxu0 0.0
    %156 = vmatpush1.msra.mxu0 0.0
    %157 = vmatprep.subr.mxu0 0.0
    %158 = vmatpush1.msra.mxu0 0.0
    %159 = vmatprep.subr.mxu0 0.0
    %160 = vmatpush1.msra.mxu0 0.0
    %161 = vmatprep.subr.mxu0 0.0
    %162 = vmatpush1.msra.mxu0 0.0
    %163 = vmatprep.subr.mxu0 0.0
    %164 = vmatpush1.msra.mxu0 0.0
    %165 = vmatprep.subr.mxu0 0.0
    %166 = vmatpush1.msra.mxu0 0.0
    %167 = vmatprep.subr.mxu0 0.0
    %168 = vmatpush1.msra.mxu0 0.0
    %169 = vmatprep.subr.mxu0 0.0
    %170 = vmatpush1.msra.mxu0 0.0
    %171 = vmatprep.subr.mxu0 0.0
    %172 = vmatpush1.msra.mxu0 0.0
    %173 = vmatprep.subr.mxu0 0.0
    %174 = vmatpush1.msra.mxu0 0.0
    %175 = vmatprep.subr.mxu0 0.0
    %176 = vmatpush1.msra.mxu0 0.0
    %177 = vmatprep.subr.mxu0 0.0
    %178 = vmatpush1.msra.mxu0 0.0
    %179 = vmatprep.subr.mxu0 0.0
    %180 = vmatpush1.msra.mxu0 0.0
    %181 = vmatprep.subr.mxu0 0.0
    %182 = vmatpush1.msra.mxu0 0.0
    %183 = vmatprep.subr.mxu0 0.0
    %184 = vmatpush1.msra.mxu0 0.0
    %185 = vmatprep.subr.mxu0 0.0
    %186 = vmatpush1.msra.mxu0 0.0
    %187 = vmatprep.subr.mxu0 0.0
    %188 = vmatpush1.msra.mxu0 0.0
    %189 = vmatprep.subr.mxu0 0.0
    %190 = vmatpush1.msra.mxu0 0.0
    %191 = vmatprep.subr.mxu0 0.0
    %192 = vmatpush1.msra.mxu0 0.0
    %193 = vmatprep.subr.mxu0 0.0
    %194 = vmatpush1.msra.mxu0 0.0
    %195 = vmatprep.subr.mxu0 0.0
    %196 = vmatpush1.msra.mxu0 0.0
    %197 = vmatprep.subr.mxu0 0.0
    %198 = vmatpush1.msra.mxu0 0.0
    %199 = vmatprep.mubr.f32.mxu0 0.0
    %200 = vmatmul.mubr.f32.gmra.mrb[0].mxu0 %v133
    %v201 = vpop.f32.mrb[0].mxu0
    %v202 = vadd.f32 %v129, %v201
    %v203 = vpop.f32.mrb[0].mxu0
    %204 = vdwg.mxu0
    %v205 = vmax.f32 %v202, 0.0
    %v206 = vld [vmem:[#allocation9] sm:$0xff]
    %v207 = vld [vmem:[#allocation9 + $0x8] sm:$0xff]
    %v208 = vld [vmem:[#allocation9 + $0x10] sm:$0xff]
    %v209 = vld [vmem:[#allocation9 + $0x18] sm:$0xff]
    %v210 = vld [vmem:[#allocation11] sm:$0xff]
    %v211 = vld [vmem:[#allocation11 + $0x8] sm:$0xff]
    %v212 = vld [vmem:[#allocation11 + $0x10] sm:$0xff]
    %v213 = vld [vmem:[#allocation11 + $0x18] sm:$0xff]
    %v215 = vsel %vm131, %v119, 0
    %217 = vmatprep.subr.mxu0 0.0
    %218 = vmatpush1.msra.mxu0 %v210
    %219 = vmatprep.subr.mxu0 0.0
    %220 = vmatpush1.msra.mxu0 %v211
    %221 = vmatprep.subr.mxu0 0.0
    %222 = vmatpush1.msra.mxu0 %v212
    %223 = vmatprep.subr.mxu0 0.0
    %224 = vmatpush1.msra.mxu0 %v213
    %225 = vmatprep.subr.mxu0 0.0
    %226 = vmatpush1.msra.mxu0 0.0
    %227 = vmatprep.subr.mxu0 0.0
    %228 = vmatpush1.msra.mxu0 0.0
    %229 = vmatprep.subr.mxu0 0.0
    %230 = vmatpush1.msra.mxu0 0.0
    %231 = vmatprep.subr.mxu0 0.0
    %232 = vmatpush1.msra.mxu0 0.0
    %233 = vmatprep.subr.mxu0 0.0
    %234 = vmatpush1.msra.mxu0 0.0
    %235 = vmatprep.subr.mxu0 0.0
    %236 = vmatpush1.msra.mxu0 0.0
    %237 = vmatprep.subr.mxu0 0.0
    %238 = vmatpush1.msra.mxu0 0.0
    %239 = vmatprep.subr.mxu0 0.0
    %240 = vmatpush1.msra.mxu0 0.0
    %241 = vmatprep.subr.mxu0 0.0
    %242 = vmatpush1.msra.mxu0 0.0
    %243 = vmatprep.subr.mxu0 0.0
    %244 = vmatpush1.msra.mxu0 0.0
    %245 = vmatprep.subr.mxu0 0.0
    %246 = vmatpush1.msra.mxu0 0.0
    %247 = vmatprep.subr.mxu0 0.0
    %248 = vmatpush1.msra.mxu0 0.0
    %249 = vmatprep.subr.mxu0 0.0
    %250 = vmatpush1.msra.mxu0 0.0
    %251 = vmatprep.subr.mxu0 0.0
    %252 = vmatpush1.msra.mxu0 0.0
    %253 = vmatprep.subr.mxu0 0.0
    %254 = vmatpush1.msra.mxu0 0.0
    %255 = vmatprep.subr.mxu0 0.0
    %256 = vmatpush1.msra.mxu0 0.0
    %257 = vmatprep.subr.mxu0 0.0
    %258 = vmatpush1.msra.mxu0 0.0
    %259 = vmatprep.subr.mxu0 0.0
    %260 = vmatpush1.msra.mxu0 0.0
    %261 = vmatprep.subr.mxu0 0.0
    %262 = vmatpush1.msra.mxu0 0.0
    %263 = vmatprep.subr.mxu0 0.0
    %264 = vmatpush1.msra.mxu0 0.0
    %265 = vmatprep.subr.mxu0 0.0
    %266 = vmatpush1.msra.mxu0 0.0
    %267 = vmatprep.subr.mxu0 0.0
    %268 = vmatpush1.msra.mxu0 0.0
    %269 = vmatprep.subr.mxu0 0.0
    %270 = vmatpush1.msra.mxu0 0.0
    %271 = vmatprep.subr.mxu0 0.0
    %272 = vmatpush1.msra.mxu0 0.0
    %273 = vmatprep.subr.mxu0 0.0
    %274 = vmatpush1.msra.mxu0 0.0
    %275 = vmatprep.subr.mxu0 0.0
    %276 = vmatpush1.msra.mxu0 0.0
    %277 = vmatprep.subr.mxu0 0.0
    %278 = vmatpush1.msra.mxu0 0.0
    %279 = vmatprep.subr.mxu0 0.0
    %280 = vmatpush1.msra.mxu0 0.0
    %281 = vmatprep.mubr.f32.mxu0 0.0
    %282 = vmatmul.mubr.f32.gmra.mrb[0].mxu0 %v215
    %v283 = vpop.f32.mrb[0].mxu0
    %v284 = vadd.f32 0.0, %v283
    %v285 = vpop.f32.mrb[0].mxu0
    %286 = vdwg.mxu0
    %v288 = vsel %vm131, %v205, 0
    %290 = vmatprep.subr.mxu0 0.0
    %291 = vmatpush1.msra.mxu0 %v206
    %292 = vmatprep.subr.mxu0 0.0
    %293 = vmatpush1.msra.mxu0 %v207
    %294 = vmatprep.subr.mxu0 0.0
    %295 = vmatpush1.msra.mxu0 %v208
    %296 = vmatprep.subr.mxu0 0.0
    %297 = vmatpush1.msra.mxu0 %v209
    %298 = vmatprep.subr.mxu0 0.0
    %299 = vmatpush1.msra.mxu0 0.0
    %300 = vmatprep.subr.mxu0 0.0
    %301 = vmatpush1.msra.mxu0 0.0
    %302 = vmatprep.subr.mxu0 0.0
    %303 = vmatpush1.msra.mxu0 0.0
    %304 = vmatprep.subr.mxu0 0.0
    %305 = vmatpush1.msra.mxu0 0.0
    %306 = vmatprep.subr.mxu0 0.0
    %307 = vmatpush1.msra.mxu0 0.0
    %308 = vmatprep.subr.mxu0 0.0
    %309 = vmatpush1.msra.mxu0 0.0
    %310 = vmatprep.subr.mxu0 0.0
    %311 = vmatpush1.msra.mxu0 0.0
    %312 = vmatprep.subr.mxu0 0.0
    %313 = vmatpush1.msra.mxu0 0.0
    %314 = vmatprep.subr.mxu0 0.0
    %315 = vmatpush1.msra.mxu0 0.0
    %316 = vmatprep.subr.mxu0 0.0
    %317 = vmatpush1.msra.mxu0 0.0
    %318 = vmatprep.subr.mxu0 0.0
    %319 = vmatpush1.msra.mxu0 0.0
    %320 = vmatprep.subr.mxu0 0.0
    %321 = vmatpush1.msra.mxu0 0.0
    %322 = vmatprep.subr.mxu0 0.0
    %323 = vmatpush1.msra.mxu0 0.0
    %324 = vmatprep.subr.mxu0 0.0
    %325 = vmatpush1.msra.mxu0 0.0
    %326 = vmatprep.subr.mxu0 0.0
    %327 = vmatpush1.msra.mxu0 0.0
    %328 = vmatprep.subr.mxu0 0.0
    %329 = vmatpush1.msra.mxu0 0.0
    %330 = vmatprep.subr.mxu0 0.0
    %331 = vmatpush1.msra.mxu0 0.0
    %332 = vmatprep.subr.mxu0 0.0
    %333 = vmatpush1.msra.mxu0 0.0
    %334 = vmatprep.subr.mxu0 0.0
    %335 = vmatpush1.msra.mxu0 0.0
    %336 = vmatprep.subr.mxu0 0.0
    %337 = vmatpush1.msra.mxu0 0.0
    %338 = vmatprep.subr.mxu0 0.0
    %339 = vmatpush1.msra.mxu0 0.0
    %340 = vmatprep.subr.mxu0 0.0
    %341 = vmatpush1.msra.mxu0 0.0
    %342 = vmatprep.subr.mxu0 0.0
    %343 = vmatpush1.msra.mxu0 0.0
    %344 = vmatprep.subr.mxu0 0.0
    %345 = vmatpush1.msra.mxu0 0.0
    %346 = vmatprep.subr.mxu0 0.0
    %347 = vmatpush1.msra.mxu0 0.0
    %348 = vmatprep.subr.mxu0 0.0
    %349 = vmatpush1.msra.mxu0 0.0
    %350 = vmatprep.subr.mxu0 0.0
    %351 = vmatpush1.msra.mxu0 0.0
    %352 = vmatprep.subr.mxu0 0.0
    %353 = vmatpush1.msra.mxu0 0.0
    %354 = vmatprep.mubr.f32.mxu0 0.0
    %355 = vmatmul.mubr.f32.gmra.mrb[0].mxu0 %v288
    %v356 = vpop.f32.mrb[0].mxu0
    %v357 = vadd.f32 %v284, %v356
    %v358 = vpop.f32.mrb[0].mxu0
    %359 = vdwg.mxu0
    %v360 = vld [vmem:[%s6] sm:$0x1]
    %v362 = vlaneseq
    %v363 = vshrl.u32 %v362, 7
    %v364 = vsub.s32 0, %v363
    %v365 = vrot.slane %v360, %v364
    %v367 = vadd.f32 %v357, %v365
    %v368 = vxor.u32 %v367, 2147483648
    %v369 = vmul.f32 %v368, 1.442695
    %v370 = vpow.pop %v369
    %v371 = vadd.f32 %v370, 1.0
    %v372 = vrcp.pop %v371
    %v373 = vmul.f32 1.0, %v372
    %375 = vrot.lane.b32.xlu0 %v367, 32
    %v376 = vpop.permute.xlu0 %375
    %v378 = vmul.f32 %v373, %v376
    %380 = vrot.lane.b32.xlu0 %v378, 64
    %v381 = vpop.permute.xlu0 %380
    %v383 = vadd.f32 %v367, %v381
    %v384 = vtanh.pop %v383
    %v385 = vsub.f32 1.0, %v373
    %387 = vrot.lane.b32.xlu0 %v384, 96
    %v388 = vpop.permute.xlu0 %387
    %v390 = vmul.f32 %v385, %v388
    %391 = vrot.lane.b32.xlu0 %v119, 32
    %v392 = vpop.permute.xlu0 %391
    %v394 = vmul.f32 %v373, %v392
    %v395 = vadd.f32 %v390, %v394
    %v396 = vld [vmem:[#allocation12] sm:$0xff]
    %v397 = vld [vmem:[#allocation12 + $0x8] sm:$0xff]
    %v398 = vld [vmem:[#allocation12 + $0x10] sm:$0xff]
    %v399 = vld [vmem:[#allocation12 + $0x18] sm:$0xff]
    %v400 = vld [vmem:[%s8] sm:$0x1]
    %v402 = vlaneseq
    %v403 = vshrl.u32 %v402, 7
    %v404 = vsub.s32 0, %v403
    %v405 = vrot.slane %v400, %v404
    %408 = vrot.lane.b32.xlu0 %v395, 96
    %v409 = vpop.permute.xlu0 %408
    %v410 = vsel %vm131, %v409, 0
    %412 = vmatprep.subr.mxu0 0.0
    %413 = vmatpush1.msra.mxu0 %v396
    %414 = vmatprep.subr.mxu0 0.0
    %415 = vmatpush1.msra.mxu0 %v397
    %416 = vmatprep.subr.mxu0 0.0
    %417 = vmatpush1.msra.mxu0 %v398
    %418 = vmatprep.subr.mxu0 0.0
    %419 = vmatpush1.msra.mxu0 %v399
    %420 = vmatprep.subr.mxu0 0.0
    %421 = vmatpush1.msra.mxu0 0.0
    %422 = vmatprep.subr.mxu0 0.0
    %423 = vmatpush1.msra.mxu0 0.0
    %424 = vmatprep.subr.mxu0 0.0
    %425 = vmatpush1.msra.mxu0 0.0
    %426 = vmatprep.subr.mxu0 0.0
    %427 = vmatpush1.msra.mxu0 0.0
    %428 = vmatprep.subr.mxu0 0.0
    %429 = vmatpush1.msra.mxu0 0.0
    %430 = vmatprep.subr.mxu0 0.0
    %431 = vmatpush1.msra.mxu0 0.0
    %432 = vmatprep.subr.mxu0 0.0
    %433 = vmatpush1.msra.mxu0 0.0
    %434 = vmatprep.subr.mxu0 0.0
    %435 = vmatpush1.msra.mxu0 0.0
    %436 = vmatprep.subr.mxu0 0.0
    %437 = vmatpush1.msra.mxu0 0.0
    %438 = vmatprep.subr.mxu0 0.0
    %439 = vmatpush1.msra.mxu0 0.0
    %440 = vmatprep.subr.mxu0 0.0
    %441 = vmatpush1.msra.mxu0 0.0
    %442 = vmatprep.subr.mxu0 0.0
    %443 = vmatpush1.msra.mxu0 0.0
    %444 = vmatprep.subr.mxu0 0.0
    %445 = vmatpush1.msra.mxu0 0.0
    %446 = vmatprep.subr.mxu0 0.0
    %447 = vmatpush1.msra.mxu0 0.0
    %448 = vmatprep.subr.mxu0 0.0
    %449 = vmatpush1.msra.mxu0 0.0
    %450 = vmatprep.subr.mxu0 0.0
    %451 = vmatpush1.msra.mxu0 0.0
    %452 = vmatprep.subr.mxu0 0.0
    %453 = vmatpush1.msra.mxu0 0.0
    %454 = vmatprep.subr.mxu0 0.0
    %455 = vmatpush1.msra.mxu0 0.0
    %456 = vmatprep.subr.mxu0 0.0
    %457 = vmatpush1.msra.mxu0 0.0
    %458 = vmatprep.subr.mxu0 0.0
    %459 = vmatpush1.msra.mxu0 0.0
    %460 = vmatprep.subr.mxu0 0.0
    %461 = vmatpush1.msra.mxu0 0.0
    %462 = vmatprep.subr.mxu0 0.0
    %463 = vmatpush1.msra.mxu0 0.0
    %464 = vmatprep.subr.mxu0 0.0
    %465 = vmatpush1.msra.mxu0 0.0
    %466 = vmatprep.subr.mxu0 0.0
    %467 = vmatpush1.msra.mxu0 0.0
    %468 = vmatprep.subr.mxu0 0.0
    %469 = vmatpush1.msra.mxu0 0.0
    %470 = vmatprep.subr.mxu0 0.0
    %471 = vmatpush1.msra.mxu0 0.0
    %472 = vmatprep.subr.mxu0 0.0
    %473 = vmatpush1.msra.mxu0 0.0
    %474 = vmatprep.subr.mxu0 0.0
    %475 = vmatpush1.msra.mxu0 0.0
    %476 = vmatprep.mubr.f32.mxu0 0.0
    %477 = vmatmul.mubr.f32.gmra.mrb[0].mxu0 %v410
    %v478 = vpop.f32.mrb[0].mxu0
    %v479 = vadd.f32 %v405, %v478
    %v480 = vpop.f32.mrb[0].mxu0
    %481 = vdwg.mxu0
    %482 = vst [vmem:[#allocation14] sm:$0xff] %v479
    %484 = vst.msk [vmem:[#allocation2] sm:$0xff] %vm131, %v409
    // Predicated region
    $region66: #{tpu_custom_call.1} parent=1 // pred_check
      _
    $region67: #{tpu_custom_call.1} parent=1 // pred_check_branch
      %486 = sbr.rel (0) target = $region69
    $region68: #{tpu_custom_call.1} parent=1 // pred_region
      %s488 = ssub.s32 128, 128
      %489 = vsyncadd [#allocation5], %s488
      %s491 = sshll.u32 [#allocation14], 4
      %s492 = int_to_ptr.vmem [resolvable:$true] %s491
      %494 = dma.vmem_to_hbm [thread:$0]  %s492, 128, %s9, [#allocation5]
    $region69: #{tpu_custom_call.1} parent=1 // pred_fallthru
      _
    // Predicated region
    $region70: #{tpu_custom_call.1} parent=1 // pred_check
      _
    $region71: #{tpu_custom_call.1} parent=1 // pred_check_branch
      %496 = sbr.rel (0) target = $region73
    $region72: #{tpu_custom_call.1} parent=1 // pred_region
      %497 = dma.done [#allocation5], 128
    $region73: #{tpu_custom_call.1} parent=1 // pred_fallthru
      _
    %498 = vsyncpa [#allocation4], 1
    %499 = vsyncpa [#allocation7], 1
    %500 = vsyncpa [#allocation10], 1
    %501 = vsyncpa [#allocation13], 1
    %502 = vsyncpa [#allocation5], 1

</llo_original>
